<compile_context>
chip_gen: v7x
topology: tpu7x:2x2x1
jax: 0.10.0
libtpu: 0.0.40
codegen_flags: <defaults>
</compile_context>

<pallas_src>
import jax
import jax.numpy as jnp
from jax import lax
from jax.experimental import pallas as pl
from jax.experimental.pallas import tpu as pltpu


def _round_up(x, m):
    return (x + m - 1) // m * m


# ---------------------------------------------------------------------------
# Phase 1: time-parallel input projection.
#   gi[s*b] = x[s*b] @ W_ih^T + (b_ih + [b_hr, b_hz, 0])
# ---------------------------------------------------------------------------
def gru_input_proj_kernel(x_ref, wih_ref, bi_ref, gi_ref):
    gi_ref[...] = (
        jnp.dot(x_ref[...].astype(wih_ref.dtype), wih_ref[...],
                preferred_element_type=jnp.float32)
        + bi_ref[...])


# ---------------------------------------------------------------------------
# Phase 2: the sequential recurrence.
#   grid = (batch_blocks [parallel], time_chunks [arbitrary])
#   Per chunk: unrolled loop over t_chunk steps; one fused (Bb,Hp)x(Hp,3Hp)
#   MXU matmul per step, sigmoid/tanh on the EUP, blends on the VPU, all f32.
# ---------------------------------------------------------------------------
def gru_recurrent_kernel(gi_ref, whh_ref, bhn_ref, full_ref, h_scratch):
    # INVARIANT: the time axis MUST be the innermost ("arbitrary") grid axis
    # and the batch axis "parallel" (scratch is private per TensorCore);
    # otherwise the reset below / carried hidden state are silently wrong.
    t_chunk_idx = pl.program_id(1)

    # h0 = zeros (PyTorch default when no initial hidden state is passed).
    # Padded hidden lanes stay zero through the whole recurrence because the
    # weight/bias padding is zero (padded h_new = (1-0.5)*0 + 0.5*0 = 0).
    @pl.when(t_chunk_idx == 0)
    def _():
        h_scratch[...] = jnp.zeros_like(h_scratch)

    bb, hp = h_scratch.shape
    whh = whh_ref[...]                                   # (Hp, 3Hp) hoisted
    # Hoisted: JAX does not CSE broadcast_in_dim, so doing this inside the
    # unrolled step loop would re-materialize it t_chunk times.
    bhn_b = jnp.broadcast_to(bhn_ref[...], (bb, hp))     # (Bb, Hp)

    def step(i, h):
        gi = gi_ref[i]                                        # (Bb, 3Hp) f32
        gh = jnp.dot(h.astype(whh.dtype), whh,
                     preferred_element_type=jnp.float32)      # (Bb, 3Hp) f32
        # PyTorch gate order: r, z, n.  Gate boundaries are multiples of 128
        # lanes, so these slices never split a vreg.
        r = jax.nn.sigmoid(gi[:, :hp] + gh[:, :hp])
        z = jax.nn.sigmoid(gi[:, hp:2 * hp] + gh[:, hp:2 * hp])
        n = jnp.tanh(gi[:, 2 * hp:] + r * (gh[:, 2 * hp:] + bhn_b))
        h_new = (1.0 - z) * n + z * h
        full_ref[i] = h_new.astype(full_ref.dtype)
        return h_new

    h_scratch[...] = lax.fori_loop(0, gi_ref.shape[0], step, h_scratch[...],
                                   unroll=True)


def gru_forward(x, w_ih, w_hh, b_ih, b_hh, *, t_chunk=16, batch_block=None,
                param_dtype=jnp.float32, p1_target_rows=512,
                vmem_limit_bytes=64 * 1024 * 1024):
    """x: (S, B, I); w_ih: (3H, I); w_hh: (3H, H); b_ih/b_hh: (3H,).

    param_dtype=jnp.bfloat16 enables the bf16 MXU-operand fast path (valid on
    v5e as well as v6e/v7x); accumulation and gate math stay f32.
    """
    S, B, I = x.shape
    H = w_hh.shape[1]
    f32 = jnp.float32

    # ----- lane/sublane-aligned padded sizes & block selection --------------
    Hp = _round_up(H, 128)            # each gate block -> multiple of 128 lanes

    # batch_block: fill the MXU M dimension (up to 128 rows); for large B this
    # also yields >=2 independent "parallel" batch blocks so v7x's two
    # TensorCores both get work.
    if batch_block is None:
        batch_block = min(_round_up(B, 8), 128)
    Bp = _round_up(B, batch_block)    # batch -> multiple of batch_block (>=8)

    # Avoid gross time padding for short sequences.
    t_chunk = max(1, min(t_chunk, _round_up(S, 8)))
    Sp0 = _round_up(S, t_chunk)
    # Phase-1 row block: ~p1_target_rows rows, as a multiple of t_chunk*Bp so
    # one Sp works for both phases; capped at the whole (padded) sequence.
    k = max(1, -(-p1_target_rows // (t_chunk * Bp)))      # ceil division
    p1_tsteps = min(t_chunk * k, Sp0)
    Sp = _round_up(S, p1_tsteps)      # multiple of both t_chunk and p1_tsteps

    # ----- parameter packing -------------------------------------------------
    def pad_gate_cols(w):             # (rows, 3H) -> (rows, 3Hp), zero pad/gate
        r, z, n = w[:, :H], w[:, H:2 * H], w[:, 2 * H:]
        pad = ((0, 0), (0, Hp - H))
        return jnp.concatenate(
            [jnp.pad(r, pad), jnp.pad(z, pad), jnp.pad(n, pad)], axis=1)

    def pad_h(v):
        return jnp.pad(v.astype(f32), (0, Hp - H))

    # W_ih^T: (I, 3Hp);  W_hh^T: (Hp, 3Hp) (extra rows/cols are zero).
    wih_t = pad_gate_cols(jnp.transpose(w_ih).astype(f32)).astype(param_dtype)
    whh_t = pad_gate_cols(jnp.transpose(w_hh).astype(f32))
    whh_t = jnp.pad(whh_t, ((0, Hp - H), (0, 0))).astype(param_dtype)

    # Fold biases: r/z recurrent biases are plain adds -> fold into the phase-1
    # bias.  b_hn must stay inside r*(...), so it is kept separate.
    bi = jnp.concatenate([pad_h(b_ih[:H] + b_hh[:H]),
                          pad_h(b_ih[H:2 * H] + b_hh[H:2 * H]),
                          pad_h(b_ih[2 * H:])]).reshape(1, 3 * Hp)
    bhn = pad_h(b_hh[2 * H:]).reshape(1, Hp)

    # Cast x in the wrapper (bf16 path halves the x HBM read + VMEM).
    x_pad = jnp.pad(x.astype(f32), ((0, Sp - S), (0, Bp - B), (0, 0)))
    x2 = x_pad.reshape(Sp * Bp, I).astype(param_dtype)

    # ---------------- phase 1: time-parallel input projection ---------------
    n_rows_blk = p1_tsteps * Bp
    gi2 = pl.pallas_call(
        gru_input_proj_kernel,
        out_shape=jax.ShapeDtypeStruct((Sp * Bp, 3 * Hp), f32),
        grid_spec=pltpu.PrefetchScalarGridSpec(
            num_scalar_prefetch=0,
            grid=(Sp // p1_tsteps,),
            in_specs=[
                pl.BlockSpec((n_rows_blk, I), lambda t: (t, 0)),
                # Constant blocks: single-buffer (no point double-buffering).
                pl.BlockSpec((I, 3 * Hp), lambda t: (0, 0),
                             pipeline_mode=pl.Buffered(1)),
                pl.BlockSpec((1, 3 * Hp), lambda t: (0, 0),
                             pipeline_mode=pl.Buffered(1)),
            ],
            out_specs=pl.BlockSpec((n_rows_blk, 3 * Hp), lambda t: (t, 0)),
        ),
        compiler_params=pltpu.CompilerParams(
            dimension_semantics=("parallel",),
            vmem_limit_bytes=vmem_limit_bytes),
    )(x2, wih_t, bi)
    gi = gi2.reshape(Sp, Bp, 3 * Hp)

    # ---------------- phase 2: sequential recurrence -------------------------
    # TODO(synk): for very large H (>= ~2500) on v7x, additionally tile the
    # 3Hp (N) axis of whh with an inner accumulation loop; a single resident
    # copy approaches the 64 MiB VMEM even single-buffered in bf16.
    full_p = pl.pallas_call(
        gru_recurrent_kernel,
        out_shape=jax.ShapeDtypeStruct((Sp, Bp, Hp), f32),
        grid_spec=pltpu.PrefetchScalarGridSpec(
            num_scalar_prefetch=0,
            grid=(Bp // batch_block, Sp // t_chunk),
            in_specs=[
                pl.BlockSpec((t_chunk, batch_block, 3 * Hp),
                             lambda b, t: (t, b, 0)),
                # Constant weight/bias blocks: single-buffer to halve their
                # VMEM footprint (whh dominates; critical on v7x's 64 MiB).
                pl.BlockSpec((Hp, 3 * Hp), lambda b, t: (0, 0),
                             pipeline_mode=pl.Buffered(1)),
                pl.BlockSpec((1, Hp), lambda b, t: (0, 0),
                             pipeline_mode=pl.Buffered(1)),
            ],
            out_specs=pl.BlockSpec((t_chunk, batch_block, Hp),
                                   lambda b, t: (t, b, 0)),
            scratch_shapes=[pltpu.VMEM((batch_block, Hp), jnp.float32)],
        ),
        compiler_params=pltpu.CompilerParams(
            dimension_semantics=("parallel", "arbitrary"),
            vmem_limit_bytes=vmem_limit_bytes),
    )(gi, whh_t, bhn)

    full = full_p[:S, :B, :H]
    last = full[-1:]            # (1, B, H): final hidden state, sliced outside
    return full, last


def gru_reference(x, w_ih, w_hh, b_ih, b_hh):
    """Pure-JAX reference (same math as torch.nn.GRU forward)."""
    S, B, I = x.shape
    H = w_hh.shape[1]

    def step(h, x_t):
        gi = x_t @ w_ih.T + b_ih
        gh = h @ w_hh.T + b_hh
        i_r, i_z, i_n = gi[:, :H], gi[:, H:2 * H], gi[:, 2 * H:]
        h_r, h_z, h_n = gh[:, :H], gh[:, H:2 * H], gh[:, 2 * H:]
        r = jax.nn.sigmoid(i_r + h_r)
        z = jax.nn.sigmoid(i_z + h_z)
        n = jnp.tanh(i_n + r * h_n)
        h_new = (1.0 - z) * n + z * h
        return h_new, h_new

    h0 = jnp.zeros((B, H), jnp.float32)
    h_last, full = lax.scan(step, h0, x)
    return full, h_last[None]


if __name__ == "__main__":
    SEQ, BATCH, INPUT, HIDDEN = 8, 4, 16, 32

    key = jax.random.PRNGKey(0)
    kx, k1, k2, k3, k4 = jax.random.split(key, 5)

    # Deterministic parameter init mimicking PyTorch: U(-1/sqrt(H), 1/sqrt(H)).
    bound = 1.0 / (HIDDEN ** 0.5)
    x = jax.random.normal(kx, (SEQ, BATCH, INPUT), jnp.float32)
    w_ih = jax.random.uniform(k1, (3 * HIDDEN, INPUT), jnp.float32, -bound, bound)
    w_hh = jax.random.uniform(k2, (3 * HIDDEN, HIDDEN), jnp.float32, -bound, bound)
    b_ih = jax.random.uniform(k3, (3 * HIDDEN,), jnp.float32, -bound, bound)
    b_hh = jax.random.uniform(k4, (3 * HIDDEN,), jnp.float32, -bound, bound)

    full_ref, last_ref = gru_reference(x, w_ih, w_hh, b_ih, b_hh)

    # f32 matmul operands: bitwise-close to the reference.
    full, last = jax.block_until_ready(
        gru_forward(x, w_ih, w_hh, b_ih, b_hh, param_dtype=jnp.float32))
    assert full.shape == (SEQ, BATCH, HIDDEN)
    assert last.shape == (1, BATCH, HIDDEN)
    assert jnp.allclose(full, full_ref, atol=1e-5, rtol=1e-5)
    assert jnp.allclose(last, last_ref, atol=1e-5, rtol=1e-5)

    # bf16 MXU-operand fast path (v5e/v6e/v7x): f32 accumulation + f32 gate
    # math, so only the matmul inputs are reduced precision -> loose tolerance
    # (rounding of the bf16-cast hidden state compounds with sequence length).
    full_bf, last_bf = jax.block_until_ready(
        gru_forward(x, w_ih, w_hh, b_ih, b_hh, param_dtype=jnp.bfloat16))
    assert jnp.allclose(full_bf, full_ref, atol=5e-2, rtol=5e-2)
    assert jnp.allclose(last_bf, last_ref, atol=5e-2, rtol=5e-2)

    print("KERNEL_OK")
</pallas_src>

<mosaic_0001>
module attributes {stable_mosaic.version = 11 : i64} {
  func.func @gru_input_proj_kernel(%arg0: i32, %arg1: memref<64x16xf32, #tpu.memory_space<vmem>>, %arg2: memref<16x384xf32, #tpu.memory_space<vmem>>, %arg3: memref<1x384xf32, #tpu.memory_space<vmem>>, %arg4: memref<64x384xf32, #tpu.memory_space<vmem>>) attributes {dimension_semantics = [#tpu.dimension_semantics<parallel>], iteration_bounds = array<i64: 1>, scalar_prefetch = 0 : i64, scratch_operands = 0 : i64, tpu.core_type = #tpu.core_type<tc>, window_params = [{transform_indices = @transform_0, window_bounds = array<i64: 64, 16>}, {pipeline_mode = #tpu.pipeline_mode<synchronous>, transform_indices = @transform_1, window_bounds = array<i64: 16, 384>}, {pipeline_mode = #tpu.pipeline_mode<synchronous>, transform_indices = @transform_2, window_bounds = array<i64: 1, 384>}, {transform_indices = @transform_3, window_bounds = array<i64: 64, 384>}]} {
    %c0 = arith.constant 0 : index
    %c0_0 = arith.constant 0 : index
    %0 = vector.load %arg1[%c0, %c0_0] : memref<64x16xf32, #tpu.memory_space<vmem>>, vector<64x16xf32>
    %c0_1 = arith.constant 0 : index
    %c0_2 = arith.constant 0 : index
    %1 = vector.load %arg2[%c0_1, %c0_2] : memref<16x384xf32, #tpu.memory_space<vmem>>, vector<16x384xf32>
    %cst = arith.constant dense<0.000000e+00> : vector<64x384xf32>
    %2 = tpu.matmul %0, %1, %cst {dimension_numbers = #tpu.dot_dimension_numbers<[1], [0], [0], [1], [0, 0, 1, 1], [], []>} : vector<64x16xf32>, vector<16x384xf32>, vector<64x384xf32> -> vector<64x384xf32>
    %c0_3 = arith.constant 0 : index
    %c0_4 = arith.constant 0 : index
    %3 = vector.load %arg3[%c0_3, %c0_4] : memref<1x384xf32, #tpu.memory_space<vmem>>, vector<1x384xf32>
    %4 = vector.broadcast %3 : vector<1x384xf32> to vector<64x384xf32>
    %5 = arith.addf %2, %4 : vector<64x384xf32>
    %c0_5 = arith.constant 0 : index
    %c0_6 = arith.constant 0 : index
    %6 = vector.load %arg4[%c0_5, %c0_6] : memref<64x384xf32, #tpu.memory_space<vmem>>, vector<64x384xf32>
    tpu.vector_store %arg4[%c0_5, %c0_6], %5 {strides = array<i32>} : memref<64x384xf32, #tpu.memory_space<vmem>>, vector<64x384xf32>,
    return
  }
  func.func @transform_0(%arg0: i32) -> (i32, i32) {
    %c0_i32 = arith.constant 0 : i32
    %c0_i32_0 = arith.constant 0 : i32
    return %arg0, %c0_i32 : i32, i32
  }
  func.func @transform_1(%arg0: i32) -> (i32, i32) {
    %c0_i32 = arith.constant 0 : i32
    %c0_i32_0 = arith.constant 0 : i32
    %c0_i32_1 = arith.constant 0 : i32
    return %c0_i32, %c0_i32_0 : i32, i32
  }
  func.func @transform_2(%arg0: i32) -> (i32, i32) {
    %c0_i32 = arith.constant 0 : i32
    %c0_i32_0 = arith.constant 0 : i32
    %c0_i32_1 = arith.constant 0 : i32
    return %c0_i32, %c0_i32_0 : i32, i32
  }
  func.func @transform_3(%arg0: i32) -> (i32, i32) {
    %c0_i32 = arith.constant 0 : i32
    %c0_i32_0 = arith.constant 0 : i32
    return %arg0, %c0_i32 : i32, i32
  }
}

</mosaic_0001>

<llo_original>
// kernel: tpu_custom_call.1
$region0: #{tpu_custom_call.1}
  #allocation0 [shape = 'u32[]', space=smem, size = 0x4, offset = 0x4, fixed_abs, tag = 'smem constant byte address 0x4 - core index']
  #allocation1 [shape = 'u32[144,128]{1,0:T(1,128)}', space=vmem, size = 0x12000, scoped, tag = 'internal scratch']
  %s0 = inlined_call_operand.hbm [shape: f32[64,16], index: 0, kind: input, shape index: {}]
  %s1 = inlined_call_operand.hbm [shape: f32[16,384], index: 1, kind: input, shape index: {}]
  %s2 = inlined_call_operand.hbm [shape: f32[1,384], index: 2, kind: input, shape index: {}]
  %s3 = inlined_call_operand.hbm [shape: f32[64,384], index: 3, kind: output, shape index: {}]
  %s4 = sld [smem:[#allocation0]]
  $region34: #{tpu_custom_call.1} parent=0
    _
  %s6 = ssub.s32 1, %s4
  %s7 = scalar_select 0, %s6, %s4
  $region1: #{tpu_custom_call.1} parent=0
    #allocation2 [shape = 'u8[32768]{0}', space=vmem, size = 0x8000, scoped, tag = 'input window, operand 0, single buffered']
    #allocation3 [shape = 's32[1]{0}', space=sflag, size = 0x4, scoped, tag = 'scoped memory for tpu_custom_call.1']
    #allocation4 [shape = 's32[1]{0}', space=sflag, size = 0x4, scoped, tag = 'scoped memory for tpu_custom_call.1']
    #allocation5 [shape = 'u8[24576]{0}', space=vmem, size = 0x6000, scoped, tag = 'input window, operand 1, single buffered']
    #allocation6 [shape = 's32[1]{0}', space=sflag, size = 0x4, scoped, tag = 'scoped memory for tpu_custom_call.1']
    #allocation7 [shape = 'u8[1536]{0}', space=vmem, size = 0x800, scoped, tag = 'input window, operand 2, single buffered']
    #allocation8 [shape = 'u8[98304]{0}', space=vmem, size = 0x18000, scoped, tag = 'output window, operand 0, single buffered']
    %8 = vsyncpa [#allocation3], 0
    %9 = vsyncpa [#allocation6], 0
    %10 = vsyncpa [#allocation4], 0
    // Predicated region
    $region2: #{tpu_custom_call.1} parent=1 // pred_check
      _
    $region3: #{tpu_custom_call.1} parent=1 // pred_check_branch
      %12 = sbr.rel (0) target = $region5
    $region4: #{tpu_custom_call.1} parent=1 // pred_region
      %s14 = ssub.s32 1024, 1024
      %15 = vsyncadd [#allocation3], %s14
      %s16 = sshll.u32 [#allocation2], 4
      %s17 = int_to_ptr.vmem [resolvable:$true] %s16
      %22 = dma.hbm_to_vmem [thread:$0]  %s0, 1024, %s17, [#allocation3], 128, 128, 8
    $region5: #{tpu_custom_call.1} parent=1 // pred_fallthru
      _
    // Predicated region
    $region6: #{tpu_custom_call.1} parent=1 // pred_check
      _
    $region7: #{tpu_custom_call.1} parent=1 // pred_check_branch
      %24 = sbr.rel (0) target = $region9
    $region8: #{tpu_custom_call.1} parent=1 // pred_region
      %s26 = ssub.s32 768, 768
      %27 = vsyncadd [#allocation6], %s26
      %s28 = sshll.u32 [#allocation5], 4
      %s29 = int_to_ptr.vmem [resolvable:$true] %s28
      %34 = dma.hbm_to_vmem [thread:$0]  %s1, 768, %s29, [#allocation6], 384, 384, 24
    $region9: #{tpu_custom_call.1} parent=1 // pred_fallthru
      _
    // Predicated region
    $region10: #{tpu_custom_call.1} parent=1 // pred_check
      _
    $region11: #{tpu_custom_call.1} parent=1 // pred_check_branch
      %36 = sbr.rel (0) target = $region13
    $region12: #{tpu_custom_call.1} parent=1 // pred_region
      %s38 = ssub.s32 48, 48
      %39 = vsyncadd [#allocation6], %s38
      %s41 = sshll.u32 [#allocation7], 4
      %s42 = int_to_ptr.vmem [resolvable:$true] %s41
      %44 = dma.hbm_to_vmem [thread:$0]  %s2, 48, %s42, [#allocation6]
    $region13: #{tpu_custom_call.1} parent=1 // pred_fallthru
      _
    // Predicated region
    $region14: #{tpu_custom_call.1} parent=1 // pred_check
      _
    $region15: #{tpu_custom_call.1} parent=1 // pred_check_branch
      %46 = sbr.rel (0) target = $region17
    $region16: #{tpu_custom_call.1} parent=1 // pred_region
      %47 = dma.done [#allocation3], 1024
    $region17: #{tpu_custom_call.1} parent=1 // pred_fallthru
      _
    // Predicated region
    $region18: #{tpu_custom_call.1} parent=1 // pred_check
      _
    $region19: #{tpu_custom_call.1} parent=1 // pred_check_branch
      %49 = sbr.rel (0) target = $region21
    $region20: #{tpu_custom_call.1} parent=1 // pred_region
      %50 = dma.done [#allocation6], 768
    $region21: #{tpu_custom_call.1} parent=1 // pred_fallthru
      _
    // Predicated region
    $region22: #{tpu_custom_call.1} parent=1 // pred_check
      _
    $region23: #{tpu_custom_call.1} parent=1 // pred_check_branch
      %52 = sbr.rel (0) target = $region25
    $region24: #{tpu_custom_call.1} parent=1 // pred_region
      %53 = dma.done [#allocation6], 48
    $region25: #{tpu_custom_call.1} parent=1 // pred_fallthru
      _
    %v54 = vld [vmem:[#allocation2] sm:$0xff]
    %v55 = vld [vmem:[#allocation2 + $0x8] sm:$0xff]
    %v56 = vld [vmem:[#allocation2 + $0x10] sm:$0xff]
    %v57 = vld [vmem:[#allocation2 + $0x18] sm:$0xff]
    %v58 = vld [vmem:[#allocation2 + $0x20] sm:$0xff]
    %v59 = vld [vmem:[#allocation2 + $0x28] sm:$0xff]
    %v60 = vld [vmem:[#allocation2 + $0x30] sm:$0xff]
    %v61 = vld [vmem:[#allocation2 + $0x38] sm:$0xff]
    %v62 = vld [vmem:[#allocation5] sm:$0xff]
    %v63 = vld [vmem:[#allocation5 + $0x8] sm:$0xff]
    %v64 = vld [vmem:[#allocation5 + $0x10] sm:$0xff]
    %v65 = vld [vmem:[#allocation5 + $0x18] sm:$0xff]
    %v66 = vld [vmem:[#allocation5 + $0x20] sm:$0xff]
    %v67 = vld [vmem:[#allocation5 + $0x28] sm:$0xff]
    %v68 = vld [vmem:[#allocation7] sm:$0x7]
    %v70 = vlaneseq
    %v71 = vshrl.u32 %v70, 7
    %v72 = vsub.s32 0, %v71
    %v73 = vrot.slane %v68, %v72
    %v74 = vlaneseq
    %v75 = vshrl.u32 %v74, 7
    %v76 = vsub.s32 1, %v75
    %v77 = vrot.slane %v68, %v76
    %v78 = vlaneseq
    %v79 = vshrl.u32 %v78, 7
    %v80 = vsub.s32 2, %v79
    %v81 = vrot.slane %v68, %v80
    %vm85 = vcmask 130048
    %v87 = vsel %vm85, %v54, 0
    %v90 = vsel %vm85, %v55, 0
    %v93 = vsel %vm85, %v56, 0
    %v96 = vsel %vm85, %v57, 0
    %v99 = vsel %vm85, %v58, 0
    %v102 = vsel %vm85, %v59, 0
    %v105 = vsel %vm85, %v60, 0
    %v108 = vsel %vm85, %v61, 0
    %110 = vmatprep.subr.mxu0 %v63
    %111 = vmatpush1.msra.mxu0 %v62
    %112 = vmatprep.subr.mxu0 %v66
    %113 = vmatpush1.msra.mxu0 %v65
    %114 = vmatprep.subr.mxu0 0.0
    %115 = vmatpush1.msra.mxu0 0.0
    %116 = vmatprep.subr.mxu0 0.0
    %117 = vmatpush1.msra.mxu0 0.0
    %118 = vmatprep.subr.mxu0 0.0
    %119 = vmatpush1.msra.mxu0 0.0
    %120 = vmatprep.subr.mxu0 0.0
    %121 = vmatpush1.msra.mxu0 0.0
    %122 = vmatprep.subr.mxu0 0.0
    %123 = vmatpush1.msra.mxu0 0.0
    %124 = vmatprep.subr.mxu0 0.0
    %125 = vmatpush1.msra.mxu0 0.0
    %126 = vmatprep.subr.mxu0 0.0
    %127 = vmatpush1.msra.mxu0 0.0
    %128 = vmatprep.subr.mxu0 0.0
    %129 = vmatpush1.msra.mxu0 0.0
    %130 = vmatprep.subr.mxu0 0.0
    %131 = vmatpush1.msra.mxu0 0.0
    %132 = vmatprep.subr.mxu0 0.0
    %133 = vmatpush1.msra.mxu0 0.0
    %134 = vmatprep.subr.mxu0 0.0
    %135 = vmatpush1.msra.mxu0 0.0
    %136 = vmatprep.subr.mxu0 0.0
    %137 = vmatpush1.msra.mxu0 0.0
    %138 = vmatprep.subr.mxu0 0.0
    %139 = vmatpush1.msra.mxu0 0.0
    %140 = vmatprep.subr.mxu0 0.0
    %141 = vmatpush1.msra.mxu0 0.0
    %142 = vmatprep.subr.mxu0 0.0
    %143 = vmatpush1.msra.mxu0 0.0
    %144 = vmatprep.subr.mxu0 0.0
    %145 = vmatpush1.msra.mxu0 0.0
    %146 = vmatprep.subr.mxu0 0.0
    %147 = vmatpush1.msra.mxu0 0.0
    %148 = vmatprep.subr.mxu0 0.0
    %149 = vmatpush1.msra.mxu0 0.0
    %150 = vmatprep.subr.mxu0 0.0
    %151 = vmatpush1.msra.mxu0 0.0
    %152 = vmatprep.subr.mxu0 0.0
    %153 = vmatpush1.msra.mxu0 0.0
    %154 = vmatprep.subr.mxu0 0.0
    %155 = vmatpush1.msra.mxu0 0.0
    %156 = vmatprep.subr.mxu0 0.0
    %157 = vmatpush1.msra.mxu0 0.0
    %158 = vmatprep.subr.mxu0 0.0
    %159 = vmatpush1.msra.mxu0 0.0
    %160 = vmatprep.subr.mxu0 0.0
    %161 = vmatpush1.msra.mxu0 0.0
    %162 = vmatprep.subr.mxu0 0.0
    %163 = vmatpush1.msra.mxu0 0.0
    %164 = vmatprep.subr.mxu0 0.0
    %165 = vmatpush1.msra.mxu0 0.0
    %166 = vmatprep.subr.mxu0 0.0
    %167 = vmatpush1.msra.mxu0 0.0
    %168 = vmatprep.subr.mxu0 0.0
    %169 = vmatpush1.msra.mxu0 0.0
    %170 = vmatprep.subr.mxu0 0.0
    %171 = vmatpush1.msra.mxu0 0.0
    %172 = vmatprep.subr.mxu0 0.0
    %173 = vmatpush1.msra.mxu0 0.0
    %174 = vmatprep.mubr.f32.mxu0 0.0
    %175 = vmatmul.mubr.f32.gmra.mrb[0].mxu0 %v87
    %v176 = vpop.f32.mrb[0].mxu0
    %v177 = vadd.f32 %v73, %v176
    %v178 = vpop.f32.mrb[0].mxu0
    %v179 = vadd.f32 %v77, %v178
    %180 = vmatprep.mubr.f32.mxu0 0.0
    %181 = vmatmul.mubr.f32.gmra.mrb[0].mxu0 %v90
    %v182 = vpop.f32.mrb[0].mxu0
    %v183 = vadd.f32 %v73, %v182
    %v184 = vpop.f32.mrb[0].mxu0
    %v185 = vadd.f32 %v77, %v184
    %186 = vmatprep.mubr.f32.mxu0 0.0
    %187 = vmatmul.mubr.f32.gmra.mrb[0].mxu0 %v93
    %v188 = vpop.f32.mrb[0].mxu0
    %v189 = vadd.f32 %v73, %v188
    %v190 = vpop.f32.mrb[0].mxu0
    %v191 = vadd.f32 %v77, %v190
    %192 = vmatprep.mubr.f32.mxu0 0.0
    %193 = vmatmul.mubr.f32.gmra.mrb[0].mxu0 %v96
    %v194 = vpop.f32.mrb[0].mxu0
    %v195 = vadd.f32 %v73, %v194
    %v196 = vpop.f32.mrb[0].mxu0
    %v197 = vadd.f32 %v77, %v196
    %198 = vmatprep.mubr.f32.mxu0 0.0
    %199 = vmatmul.mubr.f32.gmra.mrb[0].mxu0 %v99
    %v200 = vpop.f32.mrb[0].mxu0
    %v201 = vadd.f32 %v73, %v200
    %v202 = vpop.f32.mrb[0].mxu0
    %v203 = vadd.f32 %v77, %v202
    %204 = vmatprep.mubr.f32.mxu0 0.0
    %205 = vmatmul.mubr.f32.gmra.mrb[0].mxu0 %v102
    %v206 = vpop.f32.mrb[0].mxu0
    %v207 = vadd.f32 %v73, %v206
    %v208 = vpop.f32.mrb[0].mxu0
    %v209 = vadd.f32 %v77, %v208
    %210 = vmatprep.mubr.f32.mxu0 0.0
    %211 = vmatmul.mubr.f32.gmra.mrb[0].mxu0 %v105
    %v212 = vpop.f32.mrb[0].mxu0
    %v213 = vadd.f32 %v73, %v212
    %v214 = vpop.f32.mrb[0].mxu0
    %v215 = vadd.f32 %v77, %v214
    %216 = vmatprep.mubr.f32.mxu0 0.0
    %217 = vmatmul.mubr.f32.gmra.mrb[0].mxu0 %v108
    %v218 = vpop.f32.mrb[0].mxu0
    %v219 = vadd.f32 %v73, %v218
    %v220 = vpop.f32.mrb[0].mxu0
    %v221 = vadd.f32 %v77, %v220
    %222 = vdwg.mxu0
    %223 = vmatprep.subr.mxu0 0.0
    %224 = vmatpush1.msra.mxu0 %v64
    %225 = vmatprep.subr.mxu0 0.0
    %226 = vmatpush1.msra.mxu0 %v67
    %227 = vmatprep.subr.mxu0 0.0
    %228 = vmatpush1.msra.mxu0 0.0
    %229 = vmatprep.subr.mxu0 0.0
    %230 = vmatpush1.msra.mxu0 0.0
    %231 = vmatprep.subr.mxu0 0.0
    %232 = vmatpush1.msra.mxu0 0.0
    %233 = vmatprep.subr.mxu0 0.0
    %234 = vmatpush1.msra.mxu0 0.0
    %235 = vmatprep.subr.mxu0 0.0
    %236 = vmatpush1.msra.mxu0 0.0
    %237 = vmatprep.subr.mxu0 0.0
    %238 = vmatpush1.msra.mxu0 0.0
    %239 = vmatprep.subr.mxu0 0.0
    %240 = vmatpush1.msra.mxu0 0.0
    %241 = vmatprep.subr.mxu0 0.0
    %242 = vmatpush1.msra.mxu0 0.0
    %243 = vmatprep.subr.mxu0 0.0
    %244 = vmatpush1.msra.mxu0 0.0
    %245 = vmatprep.subr.mxu0 0.0
    %246 = vmatpush1.msra.mxu0 0.0
    %247 = vmatprep.subr.mxu0 0.0
    %248 = vmatpush1.msra.mxu0 0.0
    %249 = vmatprep.subr.mxu0 0.0
    %250 = vmatpush1.msra.mxu0 0.0
    %251 = vmatprep.subr.mxu0 0.0
    %252 = vmatpush1.msra.mxu0 0.0
    %253 = vmatprep.subr.mxu0 0.0
    %254 = vmatpush1.msra.mxu0 0.0
    %255 = vmatprep.subr.mxu0 0.0
    %256 = vmatpush1.msra.mxu0 0.0
    %257 = vmatprep.subr.mxu0 0.0
    %258 = vmatpush1.msra.mxu0 0.0
    %259 = vmatprep.subr.mxu0 0.0
    %260 = vmatpush1.msra.mxu0 0.0
    %261 = vmatprep.subr.mxu0 0.0
    %262 = vmatpush1.msra.mxu0 0.0
    %263 = vmatprep.subr.mxu0 0.0
    %264 = vmatpush1.msra.mxu0 0.0
    %265 = vmatprep.subr.mxu0 0.0
    %266 = vmatpush1.msra.mxu0 0.0
    %267 = vmatprep.subr.mxu0 0.0
    %268 = vmatpush1.msra.mxu0 0.0
    %269 = vmatprep.subr.mxu0 0.0
    %270 = vmatpush1.msra.mxu0 0.0
    %271 = vmatprep.subr.mxu0 0.0
    %272 = vmatpush1.msra.mxu0 0.0
    %273 = vmatprep.subr.mxu0 0.0
    %274 = vmatpush1.msra.mxu0 0.0
    %275 = vmatprep.subr.mxu0 0.0
    %276 = vmatpush1.msra.mxu0 0.0
    %277 = vmatprep.subr.mxu0 0.0
    %278 = vmatpush1.msra.mxu0 0.0
    %279 = vmatprep.subr.mxu0 0.0
    %280 = vmatpush1.msra.mxu0 0.0
    %281 = vmatprep.subr.mxu0 0.0
    %282 = vmatpush1.msra.mxu0 0.0
    %283 = vmatprep.subr.mxu0 0.0
    %284 = vmatpush1.msra.mxu0 0.0
    %285 = vmatprep.subr.mxu0 0.0
    %286 = vmatpush1.msra.mxu0 0.0
    %287 = vmatprep.mubr.f32.mxu0 0.0
    %288 = vmatmul.mubr.f32.gmra.mrb[0].mxu0 %v87
    %v289 = vpop.f32.mrb[0].mxu0
    %v290 = vadd.f32 %v81, %v289
    %v291 = vpop.f32.mrb[0].mxu0
    %292 = vmatprep.mubr.f32.mxu0 0.0
    %293 = vmatmul.mubr.f32.gmra.mrb[0].mxu0 %v90
    %v294 = vpop.f32.mrb[0].mxu0
    %v295 = vadd.f32 %v81, %v294
    %v296 = vpop.f32.mrb[0].mxu0
    %297 = vmatprep.mubr.f32.mxu0 0.0
    %298 = vmatmul.mubr.f32.gmra.mrb[0].mxu0 %v93
    %v299 = vpop.f32.mrb[0].mxu0
    %v300 = vadd.f32 %v81, %v299
    %v301 = vpop.f32.mrb[0].mxu0
    %302 = vmatprep.mubr.f32.mxu0 0.0
    %303 = vmatmul.mubr.f32.gmra.mrb[0].mxu0 %v96
    %v304 = vpop.f32.mrb[0].mxu0
    %v305 = vadd.f32 %v81, %v304
    %v306 = vpop.f32.mrb[0].mxu0
    %307 = vmatprep.mubr.f32.mxu0 0.0
    %308 = vmatmul.mubr.f32.gmra.mrb[0].mxu0 %v99
    %v309 = vpop.f32.mrb[0].mxu0
    %v310 = vadd.f32 %v81, %v309
    %v311 = vpop.f32.mrb[0].mxu0
    %312 = vmatprep.mubr.f32.mxu0 0.0
    %313 = vmatmul.mubr.f32.gmra.mrb[0].mxu0 %v102
    %v314 = vpop.f32.mrb[0].mxu0
    %v315 = vadd.f32 %v81, %v314
    %v316 = vpop.f32.mrb[0].mxu0
    %317 = vmatprep.mubr.f32.mxu0 0.0
    %318 = vmatmul.mubr.f32.gmra.mrb[0].mxu0 %v105
    %v319 = vpop.f32.mrb[0].mxu0
    %v320 = vadd.f32 %v81, %v319
    %v321 = vpop.f32.mrb[0].mxu0
    %322 = vmatprep.mubr.f32.mxu0 0.0
    %323 = vmatmul.mubr.f32.gmra.mrb[0].mxu0 %v108
    %v324 = vpop.f32.mrb[0].mxu0
    %v325 = vadd.f32 %v81, %v324
    %v326 = vpop.f32.mrb[0].mxu0
    %327 = vdwg.mxu0
    %328 = vst [vmem:[#allocation8] sm:$0xff] %v177
    %329 = vst [vmem:[#allocation8 + $0x8] sm:$0xff] %v179
    %330 = vst [vmem:[#allocation8 + $0x10] sm:$0xff] %v290
    %331 = vst [vmem:[#allocation8 + $0x18] sm:$0xff] %v183
    %332 = vst [vmem:[#allocation8 + $0x20] sm:$0xff] %v185
    %333 = vst [vmem:[#allocation8 + $0x28] sm:$0xff] %v295
    %334 = vst [vmem:[#allocation8 + $0x30] sm:$0xff] %v189
    %335 = vst [vmem:[#allocation8 + $0x38] sm:$0xff] %v191
    %336 = vst [vmem:[#allocation8 + $0x40] sm:$0xff] %v300
    %337 = vst [vmem:[#allocation8 + $0x48] sm:$0xff] %v195
    %338 = vst [vmem:[#allocation8 + $0x50] sm:$0xff] %v197
    %339 = vst [vmem:[#allocation8 + $0x58] sm:$0xff] %v305
    %340 = vst [vmem:[#allocation8 + $0x60] sm:$0xff] %v201
    %341 = vst [vmem:[#allocation8 + $0x68] sm:$0xff] %v203
    %342 = vst [vmem:[#allocation8 + $0x70] sm:$0xff] %v310
    %343 = vst [vmem:[#allocation8 + $0x78] sm:$0xff] %v207
    %344 = vst [vmem:[#allocation8 + $0x80] sm:$0xff] %v209
    %345 = vst [vmem:[#allocation8 + $0x88] sm:$0xff] %v315
    %346 = vst [vmem:[#allocation8 + $0x90] sm:$0xff] %v213
    %347 = vst [vmem:[#allocation8 + $0x98] sm:$0xff] %v215
    %348 = vst [vmem:[#allocation8 + $0xa0] sm:$0xff] %v320
    %349 = vst [vmem:[#allocation8 + $0xa8] sm:$0xff] %v219
    %350 = vst [vmem:[#allocation8 + $0xb0] sm:$0xff] %v221
    %351 = vst [vmem:[#allocation8 + $0xb8] sm:$0xff] %v325
    // Predicated region
    $region26: #{tpu_custom_call.1} parent=1 // pred_check
      _
    $region27: #{tpu_custom_call.1} parent=1 // pred_check_branch
      %353 = sbr.rel (0) target = $region29
    $region28: #{tpu_custom_call.1} parent=1 // pred_region
      %s355 = ssub.s32 3072, 3072
      %356 = vsyncadd [#allocation4], %s355
      %s357 = sshll.u32 [#allocation8], 4
      %s358 = int_to_ptr.vmem [resolvable:$true] %s357
      %363 = dma.vmem_to_hbm [thread:$0]  %s358, 3072, %s3, [#allocation4], 384, 384, 24
    $region29: #{tpu_custom_call.1} parent=1 // pred_fallthru
      _
    // Predicated region
    $region30: #{tpu_custom_call.1} parent=1 // pred_check
      _
    $region31: #{tpu_custom_call.1} parent=1 // pred_check_branch
      %365 = sbr.rel (0) target = $region33
    $region32: #{tpu_custom_call.1} parent=1 // pred_region
      %366 = dma.done [#allocation4], 3072
    $region33: #{tpu_custom_call.1} parent=1 // pred_fallthru
      _
    %367 = vsyncpa [#allocation3], 1
    %368 = vsyncpa [#allocation6], 1
    %369 = vsyncpa [#allocation4], 1

</llo_original>
